<compile_context>
chip_gen: v7x
topology: tpu7x:2x2x1
jax: 0.10.0
libtpu: 0.0.40
codegen_flags: <defaults>
</compile_context>

<pallas_src>
import jax
import jax.numpy as jnp
from jax import lax
from jax.experimental import pallas as pl
from jax.experimental.pallas import tpu as pltpu

LN_EPS = 1e-4  # eps of the TTS "generic" channel LayerNorm


def _round_up(x, m):
    return (x + m - 1) // m * m


def _make_fused_kernel(n_layers, seq_lens, kernel_size, stride, pad, n_chans):
    """Fused encoder kernel for a fixed static configuration.

    Ref layout: (x0_ref, [w, b, gamma, beta] * n_layers, o_ref,
                 h_scratch * (n_layers - 1), slab_scratch?).
    """
    K = kernel_size
    C = n_chans

    def kernel(*refs):
        x0_ref = refs[0]
        param_refs = refs[1:1 + 4 * n_layers]
        o_ref = refs[1 + 4 * n_layers]
        scratch_refs = refs[2 + 4 * n_layers:]
        h_refs = scratch_refs[:n_layers - 1]
        slab_ref = scratch_refs[n_layers - 1] if n_layers > 1 else None

        for layer in range(n_layers):
            w_ref, b_ref, g_ref, be_ref = param_refs[4 * layer: 4 * layer + 4]
            L_out = seq_lens[layer + 1]

            if layer == 0:
                # Layer-0 im2col was built in the wrapper: (L1, D0pad) bf16, lane-dense.
                lhs = x0_ref[...]
            else:
                h_ref = h_refs[layer - 1]  # (L_prev + 2*pad, C) f32, zero-padded at both ends
                # Build the bf16 im2col slab: K lane-aligned contiguous column-block writes,
                # each fed by one sublane-strided read of the padded activations.
                for k in range(K):
                    slab_ref[0:L_out, k * C:(k + 1) * C] = (
                        h_ref[pl.ds(k, L_out, stride=stride), :].astype(jnp.bfloat16))
                lhs = slab_ref[0:L_out, :]  # (L_out, K*C) bf16

            # Single matmul per layer; accumulation stays inside the MXU (f32).
            y = jnp.dot(lhs, w_ref[...], preferred_element_type=jnp.float32)
            y = y + b_ref[...]                                    # bias (1, C) broadcast
            y = jnp.maximum(y, 0.0)                               # ReLU

            # Channel LayerNorm, two-pass stats, trimmed epilogue (rsqrt on the EUP).
            mean = jnp.mean(y, axis=-1, keepdims=True)            # (L, 1)
            cen = y - mean
            var = jnp.mean(cen * cen, axis=-1, keepdims=True)     # (L, 1)
            y = cen * lax.rsqrt(var + LN_EPS)
            y = y * g_ref[...] + be_ref[...]
            # Dropout(p): identity at inference.

            if layer < n_layers - 1:
                h_ref = h_refs[layer]
                if pad > 0:
                    # Per-step zeroing (2 tiny row stores); see header note on why not zero-once.
                    zeros = jnp.zeros((pad, C), h_ref.dtype)
                    h_ref[0:pad, :] = zeros
                    h_ref[pad + L_out:pad + L_out + pad, :] = zeros
                h_ref[pad:pad + L_out, :] = y
            else:
                # Fused F.avg_pool1d(x, x.size(-1)) == mean over the full time axis.
                o_ref[...] = jnp.mean(y, axis=0, keepdims=True).astype(o_ref.dtype)

    return kernel


def utterance_encoder_forward(xs_nct, params, *, kernel_size=5, stride=3):
    """xs_nct: (B, idim, T) in PyTorch NCW layout. Returns (B, n_chans, 1)."""
    K = kernel_size
    pad = (K - 1) // 2
    B, idim, T = xs_nct.shape
    n_layers = len(params)
    n_chans = params[0][0].shape[-1]

    # Static per-stage output lengths (Conv1d length formula).
    seq_lens = [T]
    for _ in range(n_layers):
        seq_lens.append((seq_lens[-1] + 2 * pad - K) // stride + 1)
    L1 = seq_lens[1]

    # ---- Layer-0 im2col in the wrapper, lane-padded so the contraction is a multiple of 128.
    d0 = K * idim
    d0_pad = max(128, _round_up(d0, 128))
    x = jnp.transpose(xs_nct, (0, 2, 1)).astype(jnp.float32)          # (B, T, idim)
    x = jnp.pad(x, ((0, 0), (pad, pad), (0, 0)))                      # (B, T + 2*pad, idim)
    win = jnp.arange(L1)[:, None] * stride + jnp.arange(K)[None, :]   # (L1, K) window row indices
    x0 = x[:, win, :].reshape(B, L1, d0)                              # (B, L1, K*idim)
    x0 = jnp.pad(x0, ((0, 0), (0, 0), (0, d0_pad - d0))).astype(jnp.bfloat16)

    # ---- Parameters: weights reshaped to single-matmul (contraction, C_out) operands, bf16.
    flat_inputs = [x0]
    in_specs = [pl.BlockSpec((None, L1, d0_pad), lambda b: (b, 0, 0))]
    for idx, (w, b, g, be) in enumerate(params):
        Kw, c_in, c_out = w.shape
        w2 = w.reshape(Kw * c_in, c_out)
        if idx == 0:
            w2 = jnp.pad(w2, ((0, d0_pad - Kw * c_in), (0, 0)))       # zero rows in lane padding
        dcontr = w2.shape[0]
        flat_inputs += [
            w2.astype(jnp.bfloat16),
            b.reshape(1, c_out).astype(jnp.float32),
            g.reshape(1, c_out).astype(jnp.float32),
            be.reshape(1, c_out).astype(jnp.float32),
        ]
        in_specs += [
            pl.BlockSpec((dcontr, c_out), lambda b: (0, 0)),
            pl.BlockSpec((1, c_out), lambda b: (0, 0)),
            pl.BlockSpec((1, c_out), lambda b: (0, 0)),
            pl.BlockSpec((1, c_out), lambda b: (0, 0)),
        ]

    # ---- VMEM scratch: padded f32 activations per intermediate layer + one shared bf16 slab.
    scratch_shapes = [
        pltpu.VMEM((seq_lens[i + 1] + 2 * pad, n_chans), jnp.float32)
        for i in range(n_layers - 1)
    ]
    max_slab_rows = 0
    if n_layers > 1:
        max_slab_rows = max(seq_lens[l + 1] for l in range(1, n_layers))
        scratch_shapes.append(pltpu.VMEM((max_slab_rows, K * n_chans), jnp.bfloat16))

    kernel = _make_fused_kernel(n_layers, seq_lens, K, stride, pad, n_chans)

    # ---- Explicit VMEM budget (v7x has only 64 MiB physical; v5e's default scoped cap is 16 MiB).
    param_bytes = sum(int(a.size) * a.dtype.itemsize for a in flat_inputs[1:])
    est = 2 * L1 * d0_pad * 2                                        # double-buffered x0 block
    est += 2 * param_bytes                                           # double-buffered params
    est += 2 * n_chans * 4                                           # output block
    est += sum((seq_lens[i + 1] + 2 * pad) * n_chans * 4 for i in range(n_layers - 1))
    est += max_slab_rows * K * n_chans * 2
    est += 8 * L1 * n_chans * 4                                      # headroom for (L, C) temporaries
    vmem_limit = int(min(100 * 2 ** 20, max(32 * 2 ** 20, 4 * est)))

    # ---- Advisory cost estimate (params counted once; they are fetched once, not per batch).
    contr = [d0_pad] + [K * n_chans] * (n_layers - 1)
    flops = 2 * B * sum(seq_lens[l + 1] * contr[l] * n_chans for l in range(n_layers))
    transcendentals = B * sum(seq_lens[l + 1] for l in range(n_layers))
    bytes_accessed = int(B * L1 * d0_pad * 2 + param_bytes + B * n_chans * 4)

    pooled = pl.pallas_call(
        kernel,
        out_shape=jax.ShapeDtypeStruct((B, 1, n_chans), jnp.float32),
        grid=(B,),
        in_specs=in_specs,
        out_specs=pl.BlockSpec((None, 1, n_chans), lambda b: (b, 0, 0)),
        scratch_shapes=scratch_shapes,
        compiler_params=pltpu.CompilerParams(
            dimension_semantics=("parallel",),
            vmem_limit_bytes=vmem_limit,
        ),
        cost_estimate=pl.CostEstimate(
            flops=flops, transcendentals=transcendentals, bytes_accessed=bytes_accessed
        ),
    )(*flat_inputs)

    return jnp.transpose(pooled, (0, 2, 1))                          # (B, n_chans, 1)


def init_params(key, idim, n_layers, n_chans, kernel_size):
    params = []
    for idx in range(n_layers):
        in_c = idim if idx == 0 else n_chans
        key, kw, kb = jax.random.split(key, 3)
        w = jax.random.normal(kw, (kernel_size, in_c, n_chans), jnp.float32) * 0.1
        b = jax.random.normal(kb, (n_chans,), jnp.float32) * 0.01
        gamma = jnp.full((n_chans,), 0.1, jnp.float32)                # generic LayerNorm init
        beta = jnp.zeros((n_chans,), jnp.float32)
        params.append((w, b, gamma, beta))
    return params


def _reference_forward(xs_nct, params, *, kernel_size=5, stride=3):
    """Pure-JAX f32 reference mirroring the PyTorch forward."""
    pad = (kernel_size - 1) // 2
    x = xs_nct
    for (w, b, g, be) in params:
        w_oik = jnp.transpose(w, (2, 1, 0))                           # (C_out, C_in, K) torch layout
        x = lax.conv_general_dilated(
            x, w_oik, window_strides=(stride,), padding=[(pad, pad)],
            dimension_numbers=("NCH", "OIH", "NCH"))
        x = x + b[None, :, None]
        x = jnp.maximum(x, 0.0)
        mean = jnp.mean(x, axis=1, keepdims=True)
        var = jnp.mean((x - mean) ** 2, axis=1, keepdims=True)
        x = (x - mean) * lax.rsqrt(var + LN_EPS)
        x = x * g[None, :, None] + be[None, :, None]
    return jnp.mean(x, axis=-1, keepdims=True)                        # avg_pool1d over full time


if __name__ == "__main__":
    B, idim, T = 2, 8, 24
    n_layers, n_chans, kernel_size, stride = 2, 128, 5, 3

    key = jax.random.PRNGKey(0)
    key, kx = jax.random.split(key)
    xs = jax.random.normal(kx, (B, idim, T), jnp.float32)             # PyTorch NCW input
    params = init_params(key, idim, n_layers, n_chans, kernel_size)

    out = utterance_encoder_forward(xs, params, kernel_size=kernel_size, stride=stride)
    out = jax.block_until_ready(out)
    assert out.shape == (B, n_chans, 1), out.shape

    ref = _reference_forward(xs, params, kernel_size=kernel_size, stride=stride)
    err = float(jnp.max(jnp.abs(out - ref)))
    assert err < 2e-2, f"max abs error vs f32 reference (bf16 matmul operands): {err}"

    print("KERNEL_OK")
</pallas_src>

<mosaic_0001>
module attributes {stable_mosaic.version = 11 : i64} {
  func.func @kernel(%arg0: i32, %arg1: memref<1x8x128xbf16, #tpu.memory_space<vmem>>, %arg2: memref<128x128xbf16, #tpu.memory_space<vmem>>, %arg3: memref<1x128xf32, #tpu.memory_space<vmem>>, %arg4: memref<1x128xf32, #tpu.memory_space<vmem>>, %arg5: memref<1x128xf32, #tpu.memory_space<vmem>>, %arg6: memref<640x128xbf16, #tpu.memory_space<vmem>>, %arg7: memref<1x128xf32, #tpu.memory_space<vmem>>, %arg8: memref<1x128xf32, #tpu.memory_space<vmem>>, %arg9: memref<1x128xf32, #tpu.memory_space<vmem>>, %arg10: memref<1x1x128xf32, #tpu.memory_space<vmem>>, %arg11: memref<12x128xf32, #tpu.memory_space<vmem>>, %arg12: memref<3x640xbf16, #tpu.memory_space<vmem>>) attributes {dimension_semantics = [#tpu.dimension_semantics<parallel>], iteration_bounds = array<i64: 2>, scalar_prefetch = 0 : i64, scratch_operands = 2 : i64, tpu.core_type = #tpu.core_type<tc>, window_params = [{transform_indices = @transform_0, window_bounds = array<i64: 1, 8, 128>}, {pipeline_mode = #tpu.pipeline_mode<synchronous>, transform_indices = @transform_1, window_bounds = array<i64: 128, 128>}, {pipeline_mode = #tpu.pipeline_mode<synchronous>, transform_indices = @transform_2, window_bounds = array<i64: 1, 128>}, {pipeline_mode = #tpu.pipeline_mode<synchronous>, transform_indices = @transform_3, window_bounds = array<i64: 1, 128>}, {pipeline_mode = #tpu.pipeline_mode<synchronous>, transform_indices = @transform_4, window_bounds = array<i64: 1, 128>}, {pipeline_mode = #tpu.pipeline_mode<synchronous>, transform_indices = @transform_5, window_bounds = array<i64: 640, 128>}, {pipeline_mode = #tpu.pipeline_mode<synchronous>, transform_indices = @transform_6, window_bounds = array<i64: 1, 128>}, {pipeline_mode = #tpu.pipeline_mode<synchronous>, transform_indices = @transform_7, window_bounds = array<i64: 1, 128>}, {pipeline_mode = #tpu.pipeline_mode<synchronous>, transform_indices = @transform_8, window_bounds = array<i64: 1, 128>}, {transform_indices = @transform_9, window_bounds = array<i64: 1, 1, 128>}]} {
    %c0 = arith.constant 0 : index
    %c0_0 = arith.constant 0 : index
    %c0_1 = arith.constant 0 : index
    %0 = vector.load %arg1[%c0, %c0_0, %c0_1] : memref<1x8x128xbf16, #tpu.memory_space<vmem>>, vector<1x8x128xbf16>
    %1 = vector.shape_cast %0 : vector<1x8x128xbf16> to vector<8x128xbf16>
    %c0_2 = arith.constant 0 : index
    %c0_3 = arith.constant 0 : index
    %2 = vector.load %arg2[%c0_2, %c0_3] : memref<128x128xbf16, #tpu.memory_space<vmem>>, vector<128x128xbf16>
    %cst = arith.constant dense<0.000000e+00> : vector<8x128xf32>
    %3 = tpu.matmul %1, %2, %cst {dimension_numbers = #tpu.dot_dimension_numbers<[1], [0], [0], [1], [0, 0, 1, 1], [], []>} : vector<8x128xbf16>, vector<128x128xbf16>, vector<8x128xf32> -> vector<8x128xf32>
    %c0_4 = arith.constant 0 : index
    %c0_5 = arith.constant 0 : index
    %4 = vector.load %arg3[%c0_4, %c0_5] : memref<1x128xf32, #tpu.memory_space<vmem>>, vector<1x128xf32>
    %5 = vector.broadcast %4 : vector<1x128xf32> to vector<8x128xf32>
    %6 = arith.addf %3, %5 : vector<8x128xf32>
    %cst_6 = arith.constant 0.000000e+00 : f32
    %7 = vector.broadcast %cst_6 : f32 to vector<8x128xf32>
    %8 = arith.maximumf %6, %7 : vector<8x128xf32>
    %cst_7 = arith.constant dense<0.000000e+00> : vector<8xf32>
    %9 = vector.multi_reduction <add>, %8, %cst_7 [1] : vector<8x128xf32> to vector<8xf32>
    %10 = vector.shape_cast %9 : vector<8xf32> to vector<8x1xf32>
    %cst_8 = arith.constant 1.280000e+02 : f32
    %11 = vector.broadcast %cst_8 : f32 to vector<8x1xf32>
    %12 = arith.divf %10, %11 : vector<8x1xf32>
    %13 = vector.broadcast %12 : vector<8x1xf32> to vector<8x128xf32>
    %14 = arith.subf %8, %13 : vector<8x128xf32>
    %15 = arith.mulf %14, %14 : vector<8x128xf32>
    %cst_9 = arith.constant dense<0.000000e+00> : vector<8xf32>
    %16 = vector.multi_reduction <add>, %15, %cst_9 [1] : vector<8x128xf32> to vector<8xf32>
    %17 = vector.shape_cast %16 : vector<8xf32> to vector<8x1xf32>
    %cst_10 = arith.constant 1.280000e+02 : f32
    %18 = vector.broadcast %cst_10 : f32 to vector<8x1xf32>
    %19 = arith.divf %17, %18 : vector<8x1xf32>
    %cst_11 = arith.constant 9.99999974E-5 : f32
    %20 = vector.broadcast %cst_11 : f32 to vector<8x1xf32>
    %21 = arith.addf %19, %20 : vector<8x1xf32>
    %22 = math.rsqrt %21 : vector<8x1xf32>
    %23 = vector.broadcast %22 : vector<8x1xf32> to vector<8x128xf32>
    %24 = arith.mulf %14, %23 : vector<8x128xf32>
    %c0_12 = arith.constant 0 : index
    %c0_13 = arith.constant 0 : index
    %25 = vector.load %arg4[%c0_12, %c0_13] : memref<1x128xf32, #tpu.memory_space<vmem>>, vector<1x128xf32>
    %26 = vector.broadcast %25 : vector<1x128xf32> to vector<8x128xf32>
    %27 = arith.mulf %24, %26 : vector<8x128xf32>
    %c0_14 = arith.constant 0 : index
    %c0_15 = arith.constant 0 : index
    %28 = vector.load %arg5[%c0_14, %c0_15] : memref<1x128xf32, #tpu.memory_space<vmem>>, vector<1x128xf32>
    %29 = vector.broadcast %28 : vector<1x128xf32> to vector<8x128xf32>
    %30 = arith.addf %27, %29 : vector<8x128xf32>
    %cst_16 = arith.constant 0.000000e+00 : f32
    %31 = vector.broadcast %cst_16 : f32 to vector<2x128xf32>
    %c0_17 = arith.constant 0 : index
    %c0_18 = arith.constant 0 : index
    %32 = vector.load %arg11[%c0_17, %c0_18] : memref<12x128xf32, #tpu.memory_space<vmem>>, vector<2x128xf32>
    tpu.vector_store %arg11[%c0_17, %c0_18], %31 {strides = array<i32>} : memref<12x128xf32, #tpu.memory_space<vmem>>, vector<2x128xf32>,
    %c10 = arith.constant 10 : index
    %c0_19 = arith.constant 0 : index
    %33 = vector.load %arg11[%c10, %c0_19] : memref<12x128xf32, #tpu.memory_space<vmem>>, vector<2x128xf32>
    tpu.vector_store %arg11[%c10, %c0_19], %31 {strides = array<i32>} : memref<12x128xf32, #tpu.memory_space<vmem>>, vector<2x128xf32>,
    %c2 = arith.constant 2 : index
    %c0_20 = arith.constant 0 : index
    %34 = vector.load %arg11[%c2, %c0_20] : memref<12x128xf32, #tpu.memory_space<vmem>>, vector<8x128xf32>
    tpu.vector_store %arg11[%c2, %c0_20], %30 {strides = array<i32>} : memref<12x128xf32, #tpu.memory_space<vmem>>, vector<8x128xf32>,
    %c0_21 = arith.constant 0 : index
    %c0_22 = arith.constant 0 : index
    %35 = tpu.strided_load %arg11[%c0_21, %c0_22] {strides = array<i32: 3, 1>} : memref<12x128xf32, #tpu.memory_space<vmem>>, vector<3x128xf32>
    %36 = arith.truncf %35 : vector<3x128xf32> to vector<3x128xbf16>
    %c0_23 = arith.constant 0 : index
    %c0_24 = arith.constant 0 : index
    %37 = vector.load %arg12[%c0_23, %c0_24] : memref<3x640xbf16, #tpu.memory_space<vmem>>, vector<3x128xbf16>
    tpu.vector_store %arg12[%c0_23, %c0_24], %36 {strides = array<i32>} : memref<3x640xbf16, #tpu.memory_space<vmem>>, vector<3x128xbf16>,
    %c1 = arith.constant 1 : index
    %c0_25 = arith.constant 0 : index
    %38 = tpu.strided_load %arg11[%c1, %c0_25] {strides = array<i32: 3, 1>} : memref<12x128xf32, #tpu.memory_space<vmem>>, vector<3x128xf32>
    %39 = arith.truncf %38 : vector<3x128xf32> to vector<3x128xbf16>
    %c0_26 = arith.constant 0 : index
    %c128 = arith.constant 128 : index
    %40 = vector.load %arg12[%c0_26, %c128] : memref<3x640xbf16, #tpu.memory_space<vmem>>, vector<3x128xbf16>
    tpu.vector_store %arg12[%c0_26, %c128], %39 {strides = array<i32>} : memref<3x640xbf16, #tpu.memory_space<vmem>>, vector<3x128xbf16>,
    %c2_27 = arith.constant 2 : index
    %c0_28 = arith.constant 0 : index
    %41 = tpu.strided_load %arg11[%c2_27, %c0_28] {strides = array<i32: 3, 1>} : memref<12x128xf32, #tpu.memory_space<vmem>>, vector<3x128xf32>
    %42 = arith.truncf %41 : vector<3x128xf32> to vector<3x128xbf16>
    %c0_29 = arith.constant 0 : index
    %c256 = arith.constant 256 : index
    %43 = vector.load %arg12[%c0_29, %c256] : memref<3x640xbf16, #tpu.memory_space<vmem>>, vector<3x128xbf16>
    tpu.vector_store %arg12[%c0_29, %c256], %42 {strides = array<i32>} : memref<3x640xbf16, #tpu.memory_space<vmem>>, vector<3x128xbf16>,
    %c3 = arith.constant 3 : index
    %c0_30 = arith.constant 0 : index
    %44 = tpu.strided_load %arg11[%c3, %c0_30] {strides = array<i32: 3, 1>} : memref<12x128xf32, #tpu.memory_space<vmem>>, vector<3x128xf32>
    %45 = arith.truncf %44 : vector<3x128xf32> to vector<3x128xbf16>
    %c0_31 = arith.constant 0 : index
    %c384 = arith.constant 384 : index
    %46 = vector.load %arg12[%c0_31, %c384] : memref<3x640xbf16, #tpu.memory_space<vmem>>, vector<3x128xbf16>
    tpu.vector_store %arg12[%c0_31, %c384], %45 {strides = array<i32>} : memref<3x640xbf16, #tpu.memory_space<vmem>>, vector<3x128xbf16>,
    %c4 = arith.constant 4 : index
    %c0_32 = arith.constant 0 : index
    %47 = tpu.strided_load %arg11[%c4, %c0_32] {strides = array<i32: 3, 1>} : memref<12x128xf32, #tpu.memory_space<vmem>>, vector<3x128xf32>
    %48 = arith.truncf %47 : vector<3x128xf32> to vector<3x128xbf16>
    %c0_33 = arith.constant 0 : index
    %c512 = arith.constant 512 : index
    %49 = vector.load %arg12[%c0_33, %c512] : memref<3x640xbf16, #tpu.memory_space<vmem>>, vector<3x128xbf16>
    tpu.vector_store %arg12[%c0_33, %c512], %48 {strides = array<i32>} : memref<3x640xbf16, #tpu.memory_space<vmem>>, vector<3x128xbf16>,
    %c0_34 = arith.constant 0 : index
    %c0_35 = arith.constant 0 : index
    %50 = vector.load %arg12[%c0_34, %c0_35] : memref<3x640xbf16, #tpu.memory_space<vmem>>, vector<3x640xbf16>
    %c0_36 = arith.constant 0 : index
    %c0_37 = arith.constant 0 : index
    %51 = vector.load %arg6[%c0_36, %c0_37] : memref<640x128xbf16, #tpu.memory_space<vmem>>, vector<640x128xbf16>
    %cst_38 = arith.constant dense<0.000000e+00> : vector<3x128xf32>
    %52 = tpu.matmul %50, %51, %cst_38 {dimension_numbers = #tpu.dot_dimension_numbers<[1], [0], [0], [1], [0, 0, 1, 1], [], []>} : vector<3x640xbf16>, vector<640x128xbf16>, vector<3x128xf32> -> vector<3x128xf32>
    %c0_39 = arith.constant 0 : index
    %c0_40 = arith.constant 0 : index
    %53 = vector.load %arg7[%c0_39, %c0_40] : memref<1x128xf32, #tpu.memory_space<vmem>>, vector<1x128xf32>
    %54 = vector.broadcast %53 : vector<1x128xf32> to vector<3x128xf32>
    %55 = arith.addf %52, %54 : vector<3x128xf32>
    %cst_41 = arith.constant 0.000000e+00 : f32
    %56 = vector.broadcast %cst_41 : f32 to vector<3x128xf32>
    %57 = arith.maximumf %55, %56 : vector<3x128xf32>
    %cst_42 = arith.constant dense<0.000000e+00> : vector<3xf32>
    %58 = vector.multi_reduction <add>, %57, %cst_42 [1] : vector<3x128xf32> to vector<3xf32>
    %59 = vector.shape_cast %58 : vector<3xf32> to vector<3x1xf32>
    %cst_43 = arith.constant 1.280000e+02 : f32
    %60 = vector.broadcast %cst_43 : f32 to vector<3x1xf32>
    %61 = arith.divf %59, %60 : vector<3x1xf32>
    %62 = vector.broadcast %61 : vector<3x1xf32> to vector<3x128xf32>
    %63 = arith.subf %57, %62 : vector<3x128xf32>
    %64 = arith.mulf %63, %63 : vector<3x128xf32>
    %cst_44 = arith.constant dense<0.000000e+00> : vector<3xf32>
    %65 = vector.multi_reduction <add>, %64, %cst_44 [1] : vector<3x128xf32> to vector<3xf32>
    %66 = vector.shape_cast %65 : vector<3xf32> to vector<3x1xf32>
    %cst_45 = arith.constant 1.280000e+02 : f32
    %67 = vector.broadcast %cst_45 : f32 to vector<3x1xf32>
    %68 = arith.divf %66, %67 : vector<3x1xf32>
    %cst_46 = arith.constant 9.99999974E-5 : f32
    %69 = vector.broadcast %cst_46 : f32 to vector<3x1xf32>
    %70 = arith.addf %68, %69 : vector<3x1xf32>
    %71 = math.rsqrt %70 : vector<3x1xf32>
    %72 = vector.broadcast %71 : vector<3x1xf32> to vector<3x128xf32>
    %73 = arith.mulf %63, %72 : vector<3x128xf32>
    %c0_47 = arith.constant 0 : index
    %c0_48 = arith.constant 0 : index
    %74 = vector.load %arg8[%c0_47, %c0_48] : memref<1x128xf32, #tpu.memory_space<vmem>>, vector<1x128xf32>
    %75 = vector.broadcast %74 : vector<1x128xf32> to vector<3x128xf32>
    %76 = arith.mulf %73, %75 : vector<3x128xf32>
    %c0_49 = arith.constant 0 : index
    %c0_50 = arith.constant 0 : index
    %77 = vector.load %arg9[%c0_49, %c0_50] : memref<1x128xf32, #tpu.memory_space<vmem>>, vector<1x128xf32>
    %78 = vector.broadcast %77 : vector<1x128xf32> to vector<3x128xf32>
    %79 = arith.addf %76, %78 : vector<3x128xf32>
    %cst_51 = arith.constant dense<0.000000e+00> : vector<128xf32>
    %80 = vector.multi_reduction <add>, %79, %cst_51 [0] : vector<3x128xf32> to vector<128xf32>
    %81 = vector.shape_cast %80 : vector<128xf32> to vector<1x128xf32>
    %cst_52 = arith.constant 3.000000e+00 : f32
    %82 = vector.broadcast %cst_52 : f32 to vector<1x128xf32>
    %83 = arith.divf %81, %82 : vector<1x128xf32>
    %c0_53 = arith.constant 0 : index
    %c0_54 = arith.constant 0 : index
    %c0_55 = arith.constant 0 : index
    %84 = vector.load %arg10[%c0_53, %c0_54, %c0_55] : memref<1x1x128xf32, #tpu.memory_space<vmem>>, vector<1x1x128xf32>
    %85 = vector.shape_cast %84 : vector<1x1x128xf32> to vector<1x128xf32>
    %86 = vector.shape_cast %83 : vector<1x128xf32> to vector<1x1x128xf32>
    tpu.vector_store %arg10[%c0_53, %c0_54, %c0_55], %86 {strides = array<i32>} : memref<1x1x128xf32, #tpu.memory_space<vmem>>, vector<1x1x128xf32>,
    return
  }
  func.func @transform_0(%arg0: i32) -> (i32, i32, i32) {
    %c0_i32 = arith.constant 0 : i32
    %c0_i32_0 = arith.constant 0 : i32
    %c0_i32_1 = arith.constant 0 : i32
    return %arg0, %c0_i32, %c0_i32_0 : i32, i32, i32
  }
  func.func @transform_1(%arg0: i32) -> (i32, i32) {
    %c0_i32 = arith.constant 0 : i32
    %c0_i32_0 = arith.constant 0 : i32
    %c0_i32_1 = arith.constant 0 : i32
    return %c0_i32, %c0_i32_0 : i32, i32
  }
  func.func @transform_2(%arg0: i32) -> (i32, i32) {
    %c0_i32 = arith.constant 0 : i32
    %c0_i32_0 = arith.constant 0 : i32
    %c0_i32_1 = arith.constant 0 : i32
    return %c0_i32, %c0_i32_0 : i32, i32
  }
  func.func @transform_3(%arg0: i32) -> (i32, i32) {
    %c0_i32 = arith.constant 0 : i32
    %c0_i32_0 = arith.constant 0 : i32
    %c0_i32_1 = arith.constant 0 : i32
    return %c0_i32, %c0_i32_0 : i32, i32
  }
  func.func @transform_4(%arg0: i32) -> (i32, i32) {
    %c0_i32 = arith.constant 0 : i32
    %c0_i32_0 = arith.constant 0 : i32
    %c0_i32_1 = arith.constant 0 : i32
    return %c0_i32, %c0_i32_0 : i32, i32
  }
  func.func @transform_5(%arg0: i32) -> (i32, i32) {
    %c0_i32 = arith.constant 0 : i32
    %c0_i32_0 = arith.constant 0 : i32
    %c0_i32_1 = arith.constant 0 : i32
    return %c0_i32, %c0_i32_0 : i32, i32
  }
  func.func @transform_6(%arg0: i32) -> (i32, i32) {
    %c0_i32 = arith.constant 0 : i32
    %c0_i32_0 = arith.constant 0 : i32
    %c0_i32_1 = arith.constant 0 : i32
    return %c0_i32, %c0_i32_0 : i32, i32
  }
  func.func @transform_7(%arg0: i32) -> (i32, i32) {
    %c0_i32 = arith.constant 0 : i32
    %c0_i32_0 = arith.constant 0 : i32
    %c0_i32_1 = arith.constant 0 : i32
    return %c0_i32, %c0_i32_0 : i32, i32
  }
  func.func @transform_8(%arg0: i32) -> (i32, i32) {
    %c0_i32 = arith.constant 0 : i32
    %c0_i32_0 = arith.constant 0 : i32
    %c0_i32_1 = arith.constant 0 : i32
    return %c0_i32, %c0_i32_0 : i32, i32
  }
  func.func @transform_9(%arg0: i32) -> (i32, i32, i32) {
    %c0_i32 = arith.constant 0 : i32
    %c0_i32_0 = arith.constant 0 : i32
    %c0_i32_1 = arith.constant 0 : i32
    return %arg0, %c0_i32, %c0_i32_0 : i32, i32, i32
  }
}

</mosaic_0001>

<llo_original>
// kernel: tpu_custom_call.1
$region0: #{tpu_custom_call.1}
  #allocation0 [shape = 'u32[]', space=smem, size = 0x4, offset = 0x4, fixed_abs, tag = 'smem constant byte address 0x4 - core index']
  #allocation1 [shape = 'u32[144,128]{1,0:T(1,128)}', space=vmem, size = 0x12000, scoped, tag = 'internal scratch']
  #allocation2 [shape = 'f32[12,128]{1,0:T(8,128)}', space=vmem, size = 0x2000, scoped, tag = 'scratch operand']
  #allocation3 [shape = 'bf16[3,640]{1,0:T(4,128)(2,1)}', space=vmem, size = 0x1400, scoped, tag = 'scratch operand']
  %s0 = inlined_call_operand.hbm [shape: bf16[2,8,128], index: 0, kind: input, shape index: {}]
  %s1 = inlined_call_operand.hbm [shape: bf16[128,128], index: 1, kind: input, shape index: {}]
  %s2 = inlined_call_operand.vmem [shape: f32[1,128], index: 2, kind: input, shape index: {}]
  %s3 = inlined_call_operand.vmem [shape: f32[1,128], index: 3, kind: input, shape index: {}]
  %s4 = inlined_call_operand.vmem [shape: f32[1,128], index: 4, kind: input, shape index: {}]
  %s5 = inlined_call_operand.hbm [shape: bf16[640,128], index: 5, kind: input, shape index: {}]
  %s6 = inlined_call_operand.vmem [shape: f32[1,128], index: 6, kind: input, shape index: {}]
  %s7 = inlined_call_operand.vmem [shape: f32[1,128], index: 7, kind: input, shape index: {}]
  %s8 = inlined_call_operand.vmem [shape: f32[1,128], index: 8, kind: input, shape index: {}]
  %s9 = inlined_call_operand.hbm [shape: f32[2,1,128], index: 9, kind: output, shape index: {}]
  %s10 = sld [smem:[#allocation0]]
  $region81: #{tpu_custom_call.1} parent=0
    _
  %s12 = ssub.s32 1, %s10
  %s13 = scalar_select 0, %s12, %s10
  $region1: #{tpu_custom_call.1} parent=0
    #allocation4 [shape = 'u8[4096]{0}', space=vmem, size = 0x1000, scoped, tag = 'input window, operand 0']
    #allocation5 [shape = 's32[2]{0}', space=sflag, size = 0x8, scoped, tag = 'scoped memory for tpu_custom_call.1']
    #allocation6 [shape = 's32[2]{0}', space=sflag, size = 0x8, scoped, tag = 'scoped memory for tpu_custom_call.1']
    #allocation7 [shape = 'u8[32768]{0}', space=vmem, size = 0x8000, scoped, tag = 'input window, operand 1, single buffered']
    #allocation8 [shape = 's32[1]{0}', space=sflag, size = 0x4, scoped, tag = 'scoped memory for tpu_custom_call.1']
    #allocation9 [shape = 'u8[163840]{0}', space=vmem, size = 0x28000, scoped, tag = 'input window, operand 5, single buffered']
    #allocation10 [shape = 'u8[1024]{0}', space=vmem, size = 0x400, scoped, tag = 'output window, operand 0']
    %14 = vsyncpa [#allocation5], 0
    %s15 = scalar_lea.sflag [#allocation5], 1
    %16 = vsyncpa %s15, 0
    %17 = vsyncpa [#allocation8], 0
    %18 = vsyncpa [#allocation6], 0
    %s19 = scalar_lea.sflag [#allocation6], 1
    %20 = vsyncpa %s19, 0
    loop: start=0, step=1, limit=4
    $region2: #{tpu_custom_call.1} parent=1 // loop_pre_header
      _
    $region3: #{tpu_custom_call.1} parent=1 // loop_header
      %s22 = sphi 0, %s26
      %p23 = scmp.ge.s32.totalorder %s22, 4
      %s32 = sphi 0, %s34
      %s35 = sphi 0, %s32
      %s36 = sphi 0, %s35
      %s52 = sphi 0, %s36
      %s56 = sphi 0, %s56
      %s58 = sphi 0, %s56
      %s59 = sphi 0, %s58
      %s73 = sphi 0, %s59
      %s77 = sphi 0, %s77
      %s79 = sphi 0, %s77
      %s80 = sphi 0, %s79
      %s94 = sphi 0, %s80
      %s98 = sphi 0, %s98
      %s100 = sphi 0, %s98
      %s101 = sphi 0, %s100
      %s115 = sphi 0, %s101
      %s119 = sphi 0, %s119
      %s121 = sphi 0, %s119
      %s122 = sphi 0, %s121
      %s136 = sphi 0, %s122
      %s140 = sphi 0, %s140
      %s142 = sphi 0, %s140
      %s143 = sphi 0, %s142
      %s157 = sphi 0, %s143
      %s161 = sphi 0, %s161
      %s163 = sphi 0, %s161
      %s164 = sphi 0, %s163
      %s178 = sphi 0, %s164
      %s182 = sphi 0, %s182
      %s184 = sphi 0, %s182
      %s185 = sphi 0, %s184
      %s199 = sphi 0, %s185
      %s203 = sphi 0, %s203
      %s205 = sphi 0, %s203
      %s206 = sphi 0, %s205
      %s220 = sphi 0, %s206
      %s226 = sphi 0, %s228
      %s229 = sphi 0, %s226
      %s230 = sphi 0, %s229
      %s246 = sphi 0, %s230
    $region4: #{tpu_custom_call.1} parent=1 // loop_header_branch
      %25 = sbr.rel (%p23) target = $region8
    $region5: #{tpu_custom_call.1} parent=1 // loop_body
      %s27 = ssub.s32 %s22, 1
      %s28 = ssub.s32 %s22, 2
      %s29 = sadd.s32 %s22, 1
      %s30 = ssub.s32 %s22, %s29
      %p31 = scmp.eq.s32.totalorder %s30, 0
      %s33 = sadd.s32 %s32, 1
      %s34 = scalar_select %p31, %s32, %s33
      %p37 = pneg %p31
      %p38 = scmp.eq.s32.totalorder %s22, 1
      %p39 = por %p37, %p38
      %p40 = scmp.ne.s32.totalorder %s32, %s35
      %p41 = scmp.eq.s32.totalorder %s22, 0
      %p42 = por %p40, %p41
      %p43 = scmp.ne.s32.totalorder %s32, %s35
      %p44 = scmp.eq.s32.totalorder %s27, 1
      %p45 = por %p43, %p44
      %p46 = scmp.ne.s32.totalorder %s35, %s36
      %p47 = scmp.eq.s32.totalorder %s27, 0
      %p48 = por %p46, %p47
      %p49 = scmp.ne.s32.totalorder %s35, %s36
      %p50 = scmp.eq.s32.totalorder %s28, 1
      %p51 = por %p49, %p50
      %p53 = scmp.ne.s32.totalorder %s36, %s52
      %p54 = scmp.eq.s32.totalorder %s28, 0
      %p55 = por %p53, %p54
      %s57 = sadd.s32 %s56, 1
      %p60 = scmp.eq.s32.totalorder %s22, 1
      %p61 = scmp.ne.s32.totalorder %s56, %s58
      %p62 = scmp.eq.s32.totalorder %s22, 0
      %p63 = por %p61, %p62
      %p64 = scmp.ne.s32.totalorder %s56, %s58
      %p65 = scmp.eq.s32.totalorder %s27, 1
      %p66 = por %p64, %p65
      %p67 = scmp.ne.s32.totalorder %s58, %s59
      %p68 = scmp.eq.s32.totalorder %s27, 0
      %p69 = por %p67, %p68
      %p70 = scmp.ne.s32.totalorder %s58, %s59
      %p71 = scmp.eq.s32.totalorder %s28, 1
      %p72 = por %p70, %p71
      %p74 = scmp.ne.s32.totalorder %s59, %s73
      %p75 = scmp.eq.s32.totalorder %s28, 0
      %p76 = por %p74, %p75
      %s78 = sadd.s32 %s77, 1
      %p81 = scmp.eq.s32.totalorder %s22, 1
      %p82 = scmp.ne.s32.totalorder %s77, %s79
      %p83 = scmp.eq.s32.totalorder %s22, 0
      %p84 = por %p82, %p83
      %p85 = scmp.ne.s32.totalorder %s77, %s79
      %p86 = scmp.eq.s32.totalorder %s27, 1
      %p87 = por %p85, %p86
      %p88 = scmp.ne.s32.totalorder %s79, %s80
      %p89 = scmp.eq.s32.totalorder %s27, 0
      %p90 = por %p88, %p89
      %p91 = scmp.ne.s32.totalorder %s79, %s80
      %p92 = scmp.eq.s32.totalorder %s28, 1
      %p93 = por %p91, %p92
      %p95 = scmp.ne.s32.totalorder %s80, %s94
      %p96 = scmp.eq.s32.totalorder %s28, 0
      %p97 = por %p95, %p96
      %s99 = sadd.s32 %s98, 1
      %p102 = scmp.eq.s32.totalorder %s22, 1
      %p103 = scmp.ne.s32.totalorder %s98, %s100
      %p104 = scmp.eq.s32.totalorder %s22, 0
      %p105 = por %p103, %p104
      %p106 = scmp.ne.s32.totalorder %s98, %s100
      %p107 = scmp.eq.s32.totalorder %s27, 1
      %p108 = por %p106, %p107
      %p109 = scmp.ne.s32.totalorder %s100, %s101
      %p110 = scmp.eq.s32.totalorder %s27, 0
      %p111 = por %p109, %p110
      %p112 = scmp.ne.s32.totalorder %s100, %s101
      %p113 = scmp.eq.s32.totalorder %s28, 1
      %p114 = por %p112, %p113
      %p116 = scmp.ne.s32.totalorder %s101, %s115
      %p117 = scmp.eq.s32.totalorder %s28, 0
      %p118 = por %p116, %p117
      %s120 = sadd.s32 %s119, 1
      %p123 = scmp.eq.s32.totalorder %s22, 1
      %p124 = scmp.ne.s32.totalorder %s119, %s121
      %p125 = scmp.eq.s32.totalorder %s22, 0
      %p126 = por %p124, %p125
      %p127 = scmp.ne.s32.totalorder %s119, %s121
      %p128 = scmp.eq.s32.totalorder %s27, 1
      %p129 = por %p127, %p128
      %p130 = scmp.ne.s32.totalorder %s121, %s122
      %p131 = scmp.eq.s32.totalorder %s27, 0
      %p132 = por %p130, %p131
      %p133 = scmp.ne.s32.totalorder %s121, %s122
      %p134 = scmp.eq.s32.totalorder %s28, 1
      %p135 = por %p133, %p134
      %p137 = scmp.ne.s32.totalorder %s122, %s136
      %p138 = scmp.eq.s32.totalorder %s28, 0
      %p139 = por %p137, %p138
      %s141 = sadd.s32 %s140, 1
      %p144 = scmp.eq.s32.totalorder %s22, 1
      %p145 = scmp.ne.s32.totalorder %s140, %s142
      %p146 = scmp.eq.s32.totalorder %s22, 0
      %p147 = por %p145, %p146
      %p148 = scmp.ne.s32.totalorder %s140, %s142
      %p149 = scmp.eq.s32.totalorder %s27, 1
      %p150 = por %p148, %p149
      %p151 = scmp.ne.s32.totalorder %s142, %s143
      %p152 = scmp.eq.s32.totalorder %s27, 0
      %p153 = por %p151, %p152
      %p154 = scmp.ne.s32.totalorder %s142, %s143
      %p155 = scmp.eq.s32.totalorder %s28, 1
      %p156 = por %p154, %p155
      %p158 = scmp.ne.s32.totalorder %s143, %s157
      %p159 = scmp.eq.s32.totalorder %s28, 0
      %p160 = por %p158, %p159
      %s162 = sadd.s32 %s161, 1
      %p165 = scmp.eq.s32.totalorder %s22, 1
      %p166 = scmp.ne.s32.totalorder %s161, %s163
      %p167 = scmp.eq.s32.totalorder %s22, 0
      %p168 = por %p166, %p167
      %p169 = scmp.ne.s32.totalorder %s161, %s163
      %p170 = scmp.eq.s32.totalorder %s27, 1
      %p171 = por %p169, %p170
      %p172 = scmp.ne.s32.totalorder %s163, %s164
      %p173 = scmp.eq.s32.totalorder %s27, 0
      %p174 = por %p172, %p173
      %p175 = scmp.ne.s32.totalorder %s163, %s164
      %p176 = scmp.eq.s32.totalorder %s28, 1
      %p177 = por %p175, %p176
      %p179 = scmp.ne.s32.totalorder %s164, %s178
      %p180 = scmp.eq.s32.totalorder %s28, 0
      %p181 = por %p179, %p180
      %s183 = sadd.s32 %s182, 1
      %p186 = scmp.eq.s32.totalorder %s22, 1
      %p187 = scmp.ne.s32.totalorder %s182, %s184
      %p188 = scmp.eq.s32.totalorder %s22, 0
      %p189 = por %p187, %p188
      %p190 = scmp.ne.s32.totalorder %s182, %s184
      %p191 = scmp.eq.s32.totalorder %s27, 1
      %p192 = por %p190, %p191
      %p193 = scmp.ne.s32.totalorder %s184, %s185
      %p194 = scmp.eq.s32.totalorder %s27, 0
      %p195 = por %p193, %p194
      %p196 = scmp.ne.s32.totalorder %s184, %s185
      %p197 = scmp.eq.s32.totalorder %s28, 1
      %p198 = por %p196, %p197
      %p200 = scmp.ne.s32.totalorder %s185, %s199
      %p201 = scmp.eq.s32.totalorder %s28, 0
      %p202 = por %p200, %p201
      %s204 = sadd.s32 %s203, 1
      %p207 = scmp.eq.s32.totalorder %s22, 1
      %p208 = scmp.ne.s32.totalorder %s203, %s205
      %p209 = scmp.eq.s32.totalorder %s22, 0
      %p210 = por %p208, %p209
      %p211 = scmp.ne.s32.totalorder %s203, %s205
      %p212 = scmp.eq.s32.totalorder %s27, 1
      %p213 = por %p211, %p212
      %p214 = scmp.ne.s32.totalorder %s205, %s206
      %p215 = scmp.eq.s32.totalorder %s27, 0
      %p216 = por %p214, %p215
      %p217 = scmp.ne.s32.totalorder %s205, %s206
      %p218 = scmp.eq.s32.totalorder %s28, 1
      %p219 = por %p217, %p218
      %p221 = scmp.ne.s32.totalorder %s206, %s220
      %p222 = scmp.eq.s32.totalorder %s28, 0
      %p223 = por %p221, %p222
      %s224 = ssub.s32 %s22, %s29
      %p225 = scmp.eq.s32.totalorder %s224, 0
      %s227 = sadd.s32 %s226, 1
      %s228 = scalar_select %p225, %s226, %s227
      %p231 = pneg %p225
      %p232 = scmp.eq.s32.totalorder %s22, 1
      %p233 = por %p231, %p232
      %p234 = scmp.ne.s32.totalorder %s226, %s229
      %p235 = scmp.eq.s32.totalorder %s22, 0
      %p236 = por %p234, %p235
      %p237 = scmp.ne.s32.totalorder %s226, %s229
      %p238 = scmp.eq.s32.totalorder %s27, 1
      %p239 = por %p237, %p238
      %p240 = scmp.ne.s32.totalorder %s229, %s230
      %p241 = scmp.eq.s32.totalorder %s27, 0
      %p242 = por %p240, %p241
      %p243 = scmp.ne.s32.totalorder %s229, %s230
      %p244 = scmp.eq.s32.totalorder %s28, 1
      %p245 = por %p243, %p244
      %p247 = scmp.ne.s32.totalorder %s230, %s246
      %p248 = scmp.eq.s32.totalorder %s28, 0
      %p249 = por %p247, %p248
      %p250 = scmp.le.s32.totalorder 1, %s22
      %p251 = scmp.lt.s32.totalorder %s22, 3
      %p252 = pnand %p250, %p251
      %p253 = pneg %p252
      // Predicated region
      $region9: #{tpu_custom_call.1} parent=5 // pred_check
        _
      $region10: #{tpu_custom_call.1} parent=5 // pred_check_branch
        %255 = sbr.rel (%p252) target = $region12
      $region11: #{tpu_custom_call.1} parent=5 // pred_region
        %s256 = ssub.s32 %s22, 1
        // Predicated region
        $region13: #{tpu_custom_call.1} parent=11 // pred_check
          %p257 = pneg %p69
        $region14: #{tpu_custom_call.1} parent=11 // pred_check_branch
          %259 = sbr.rel (%p257) target = $region16
        $region15: #{tpu_custom_call.1} parent=11 // pred_region
          %s261 = ssub.s32 1024, 1024
          %262 = vsyncadd [#allocation8], %s261
          %s263 = sshll.u32 [#allocation7], 4
          %s264 = int_to_ptr.vmem [resolvable:$true] %s263
          %269 = dma.hbm_to_vmem [thread:$0]  %s1, 1024, %s264, [#allocation8], 64, 64, 4
        $region16: #{tpu_custom_call.1} parent=11 // pred_fallthru
          _
        // Predicated region
        $region17: #{tpu_custom_call.1} parent=11 // pred_check
          %p270 = pneg %p90
        $region18: #{tpu_custom_call.1} parent=11 // pred_check_branch
          %272 = sbr.rel (%p270) target = $region20
        $region19: #{tpu_custom_call.1} parent=11 // pred_region
          _
        $region20: #{tpu_custom_call.1} parent=11 // pred_fallthru
          _
        // Predicated region
        $region21: #{tpu_custom_call.1} parent=11 // pred_check
          %p273 = pneg %p111
        $region22: #{tpu_custom_call.1} parent=11 // pred_check_branch
          %275 = sbr.rel (%p273) target = $region24
        $region23: #{tpu_custom_call.1} parent=11 // pred_region
          _
        $region24: #{tpu_custom_call.1} parent=11 // pred_fallthru
          _
        // Predicated region
        $region25: #{tpu_custom_call.1} parent=11 // pred_check
          %p276 = pneg %p132
        $region26: #{tpu_custom_call.1} parent=11 // pred_check_branch
          %278 = sbr.rel (%p276) target = $region28
        $region27: #{tpu_custom_call.1} parent=11 // pred_region
          _
        $region28: #{tpu_custom_call.1} parent=11 // pred_fallthru
          _
        // Predicated region
        $region29: #{tpu_custom_call.1} parent=11 // pred_check
          %p279 = pneg %p153
        $region30: #{tpu_custom_call.1} parent=11 // pred_check_branch
          %281 = sbr.rel (%p279) target = $region32
        $region31: #{tpu_custom_call.1} parent=11 // pred_region
          %s283 = ssub.s32 5120, 5120
          %284 = vsyncadd [#allocation8], %s283
          %s285 = sshll.u32 [#allocation9], 4
          %s286 = int_to_ptr.vmem [resolvable:$true] %s285
          %291 = dma.hbm_to_vmem [thread:$0]  %s5, 5120, %s286, [#allocation8], 64, 64, 4
        $region32: #{tpu_custom_call.1} parent=11 // pred_fallthru
          _
        // Predicated region
        $region33: #{tpu_custom_call.1} parent=11 // pred_check
          %p292 = pneg %p174
        $region34: #{tpu_custom_call.1} parent=11 // pred_check_branch
          %294 = sbr.rel (%p292) target = $region36
        $region35: #{tpu_custom_call.1} parent=11 // pred_region
          _
        $region36: #{tpu_custom_call.1} parent=11 // pred_fallthru
          _
        // Predicated region
        $region37: #{tpu_custom_call.1} parent=11 // pred_check
          %p295 = pneg %p195
        $region38: #{tpu_custom_call.1} parent=11 // pred_check_branch
          %297 = sbr.rel (%p295) target = $region40
        $region39: #{tpu_custom_call.1} parent=11 // pred_region
          _
        $region40: #{tpu_custom_call.1} parent=11 // pred_fallthru
          _
        // Predicated region
        $region41: #{tpu_custom_call.1} parent=11 // pred_check
          %p298 = pneg %p216
        $region42: #{tpu_custom_call.1} parent=11 // pred_check_branch
          %300 = sbr.rel (%p298) target = $region44
        $region43: #{tpu_custom_call.1} parent=11 // pred_region
          _
        $region44: #{tpu_custom_call.1} parent=11 // pred_fallthru
          _
      $region12: #{tpu_custom_call.1} parent=5 // pred_fallthru
        _
      %p301 = scmp.lt.s32.totalorder %s22, 2
      // Predicated region
      $region45: #{tpu_custom_call.1} parent=5 // pred_check
        %p302 = pneg %p301
      $region46: #{tpu_custom_call.1} parent=5 // pred_check_branch
        %304 = sbr.rel (%p302) target = $region48
      $region47: #{tpu_custom_call.1} parent=5 // pred_region
        // Predicated region
        $region49: #{tpu_custom_call.1} parent=47 // pred_check
          %p305 = pneg %p42
        $region50: #{tpu_custom_call.1} parent=47 // pred_check_branch
          %307 = sbr.rel (%p305) target = $region52
        $region51: #{tpu_custom_call.1} parent=47 // pred_region
          %s308 = sand.u32 %s32, 1
          %s309 = scalar_lea.sflag [#allocation5], %s308
          %s310 = sand.u32 %s32, 1
          %s311 = smul.addr %s310, 4
          %s312 = scalar_lea.vmem [#allocation4], %s311
          %s314 = ssub.s32 64, 64
          %315 = vsyncadd %s309, %s314
          %s316 = smul.addr %s22, 64
          %s317 = scalar_lea.hbm %s0, %s316
          %s319 = sshll.u32 %s312, 4
          %s320 = int_to_ptr.vmem [resolvable:$true] %s319
          %322 = dma.hbm_to_vmem [thread:$0]  %s317, 64, %s320, %s309
        $region52: #{tpu_custom_call.1} parent=47 // pred_fallthru
          _
      $region48: #{tpu_custom_call.1} parent=5 // pred_fallthru
        _
      %p323 = scmp.le.s32.totalorder 1, %s22
      %p324 = scmp.lt.s32.totalorder %s22, 3
      %p325 = pnand %p323, %p324
      %p326 = pneg %p325
      // Predicated region
      $region53: #{tpu_custom_call.1} parent=5 // pred_check
        _
      $region54: #{tpu_custom_call.1} parent=5 // pred_check_branch
        %328 = sbr.rel (%p325) target = $region56
      $region55: #{tpu_custom_call.1} parent=5 // pred_region
        %s329 = ssub.s32 %s22, 1
        %s330 = sand.u32 %s35, 1
        %s331 = scalar_lea.sflag [#allocation5], %s330
        %s332 = sand.u32 %s35, 1
        %s333 = smul.addr %s332, 4
        %s334 = scalar_lea.vmem [#allocation4], %s333
        // Predicated region
        $region57: #{tpu_custom_call.1} parent=55 // pred_check
          %p335 = pneg %p48
        $region58: #{tpu_custom_call.1} parent=55 // pred_check_branch
          %337 = sbr.rel (%p335) target = $region60
        $region59: #{tpu_custom_call.1} parent=55 // pred_region
          %338 = dma.done %s331, 64
        $region60: #{tpu_custom_call.1} parent=55 // pred_fallthru
          _
        // Predicated region
        $region61: #{tpu_custom_call.1} parent=55 // pred_check
          %p339 = pneg %p69
        $region62: #{tpu_custom_call.1} parent=55 // pred_check_branch
          %341 = sbr.rel (%p339) target = $region64
        $region63: #{tpu_custom_call.1} parent=55 // pred_region
          %342 = dma.done [#allocation8], 1024
        $region64: #{tpu_custom_call.1} parent=55 // pred_fallthru
          _
        // Predicated region
        $region65: #{tpu_custom_call.1} parent=55 // pred_check
          %p343 = pneg %p153
        $region66: #{tpu_custom_call.1} parent=55 // pred_check_branch
          %345 = sbr.rel (%p343) target = $region68
        $region67: #{tpu_custom_call.1} parent=55 // pred_region
          %346 = dma.done [#allocation8], 5120
        $region68: #{tpu_custom_call.1} parent=55 // pred_fallthru
          _
        %s347 = sand.u32 %s35, 1
        %s348 = scalar_lea.sflag [#allocation5], %s347
        %s349 = sand.u32 %s35, 1
        %s350 = smul.addr %s349, 4
        %s351 = scalar_lea.vmem [#allocation4], %s350
        %p352 = pneg %p48
        %p353 = pneg %p45
        %p354 = pneg %p69
        %p355 = pneg %p66
        %p356 = pneg %p90
        %p357 = pneg %p87
        %p358 = pneg %p111
        %p359 = pneg %p108
        %p360 = pneg %p132
        %p361 = pneg %p129
        %p362 = pneg %p153
        %p363 = pneg %p150
        %p364 = pneg %p174
        %p365 = pneg %p171
        %p366 = pneg %p195
        %p367 = pneg %p192
        %p368 = pneg %p216
        %p369 = pneg %p213
        %p370 = pneg %p242
        %p371 = pneg %p239
        %s372 = sand.u32 %s229, 1
        %s373 = scalar_lea.sflag [#allocation6], %s372
        %s374 = sand.u32 %s229, 1
        %s375 = scalar_lea.vmem [#allocation10], %s374
        %v377 = vld [vmem:[%s334] sm:$0xf]
        %v378 = vld [vmem:[#allocation7] sm:$0xf]
        %v379 = vld [vmem:[#allocation7 + $0x4] sm:$0xf]
        %v380 = vld [vmem:[#allocation7 + $0x8] sm:$0xf]
        %v381 = vld [vmem:[#allocation7 + $0xc] sm:$0xf]
        %v382 = vld [vmem:[#allocation7 + $0x10] sm:$0xf]
        %v383 = vld [vmem:[#allocation7 + $0x14] sm:$0xf]
        %v384 = vld [vmem:[#allocation7 + $0x18] sm:$0xf]
        %v385 = vld [vmem:[#allocation7 + $0x1c] sm:$0xf]
        %v386 = vld [vmem:[#allocation7 + $0x20] sm:$0xf]
        %v387 = vld [vmem:[#allocation7 + $0x24] sm:$0xf]
        %v388 = vld [vmem:[#allocation7 + $0x28] sm:$0xf]
        %v389 = vld [vmem:[#allocation7 + $0x2c] sm:$0xf]
        %v390 = vld [vmem:[#allocation7 + $0x30] sm:$0xf]
        %v391 = vld [vmem:[#allocation7 + $0x34] sm:$0xf]
        %v392 = vld [vmem:[#allocation7 + $0x38] sm:$0xf]
        %v393 = vld [vmem:[#allocation7 + $0x3c] sm:$0xf]
        %v394 = vld [vmem:[%s2] sm:$0x1]
        %v396 = vlaneseq
        %v397 = vshrl.u32 %v396, 7
        %v398 = vsub.s32 0, %v397
        %v399 = vrot.slane %v394, %v398
        %v417 = vunpack.c.l.b16 %v378
        %v418 = vunpack.c.l.b16 %v379
        %v419 = vunpack.c.l.b16 %v380
        %v420 = vunpack.c.l.b16 %v381
        %v421 = vunpack.c.l.b16 %v382
        %v422 = vunpack.c.l.b16 %v383
        %v423 = vunpack.c.l.b16 %v384
        %v424 = vunpack.c.l.b16 %v385
        %v425 = vunpack.c.l.b16 %v386
        %v426 = vunpack.c.l.b16 %v387
        %v427 = vunpack.c.l.b16 %v388
        %v428 = vunpack.c.l.b16 %v389
        %v429 = vunpack.c.l.b16 %v390
        %v430 = vunpack.c.l.b16 %v391
        %v431 = vunpack.c.l.b16 %v392
        %v432 = vunpack.c.l.b16 %v393
        %v433 = vpack.c.b16 %v418, %v417
        %v434 = vpack.c.b16 %v420, %v419
        %v435 = vpack.c.b16 %v422, %v421
        %v436 = vpack.c.b16 %v424, %v423
        %v437 = vpack.c.b16 %v426, %v425
        %v438 = vpack.c.b16 %v428, %v427
        %v439 = vpack.c.b16 %v430, %v429
        %v440 = vpack.c.b16 %v432, %v431
        %449 = vmatprep.subr.bf16.mxu0 0
        %450 = vmatpush1.bf16.msra.mxu0 %v433
        %451 = vmatprep.subr.bf16.mxu0 0
        %452 = vmatpush1.bf16.msra.mxu0 %v434
        %453 = vmatprep.subr.bf16.mxu0 0
        %454 = vmatpush1.bf16.msra.mxu0 %v435
        %455 = vmatprep.subr.bf16.mxu0 0
        %456 = vmatpush1.bf16.msra.mxu0 %v436
        %457 = vmatprep.subr.bf16.mxu0 0
        %458 = vmatpush1.bf16.msra.mxu0 %v437
        %459 = vmatprep.subr.bf16.mxu0 0
        %460 = vmatpush1.bf16.msra.mxu0 %v438
        %461 = vmatprep.subr.bf16.mxu0 0
        %462 = vmatpush1.bf16.msra.mxu0 %v439
        %463 = vmatprep.subr.bf16.mxu0 0
        %464 = vmatpush1.bf16.msra.mxu0 %v440
        %465 = vmatprep.subr.bf16.mxu0 0
        %466 = vmatpush1.bf16.msra.mxu0 0
        %467 = vmatprep.subr.bf16.mxu0 0
        %468 = vmatpush1.bf16.msra.mxu0 0
        %469 = vmatprep.subr.bf16.mxu0 0
        %470 = vmatpush1.bf16.msra.mxu0 0
        %471 = vmatprep.subr.bf16.mxu0 0
        %472 = vmatpush1.bf16.msra.mxu0 0
        %473 = vmatprep.subr.bf16.mxu0 0
        %474 = vmatpush1.bf16.msra.mxu0 0
        %475 = vmatprep.subr.bf16.mxu0 0
        %476 = vmatpush1.bf16.msra.mxu0 0
        %477 = vmatprep.subr.bf16.mxu0 0
        %478 = vmatpush1.bf16.msra.mxu0 0
        %479 = vmatprep.subr.bf16.mxu0 0
        %480 = vmatpush1.bf16.msra.mxu0 0
        %481 = vmatprep.mubr.bf16.mxu0 0
        %482 = vmatmul.mubr.bf16.gmra.mrb[0].mxu0 %v377
        %v483 = vpop.f32.mrb[0].mxu0
        %v484 = vadd.f32 %v399, %v483
        %v485 = vpop.f32.mrb[0].mxu0
        %v486 = vpop.f32.mrb[0].mxu0
        %v487 = vpop.f32.mrb[0].mxu0
        %488 = vdwg.mxu0
        %v489 = vmax.f32 %v484, 0.0
        %490 = vadd.xlane.f32.xlu0 %v489
        %v491 = vpop.xlane.xlu0 %490
        %v492 = vrcp.pop 128.0
        %v493 = vmul.f32 %v491, %v492
        %v494 = vsub.f32 %v489, %v493
        %v495 = vmul.f32 %v494, %v494
        %496 = vadd.xlane.f32.xlu0 %v495
        %v497 = vpop.xlane.xlu0 %496
        %v498 = vmul.f32 %v497, %v492
        %v499 = vadd.f32 %v498, 0.0001
        %v500 = vrsqrt.pop %v499
        %v501 = vmul.f32 %v494, %v500
        %v502 = vld [vmem:[%s3] sm:$0x1]
        %v504 = vlaneseq
        %v505 = vshrl.u32 %v504, 7
        %v506 = vsub.s32 0, %v505
        %v507 = vrot.slane %v502, %v506
        %v509 = vmul.f32 %v501, %v507
        %v510 = vld [vmem:[%s4] sm:$0x1]
        %v512 = vlaneseq
        %v513 = vshrl.u32 %v512, 7
        %v514 = vsub.s32 0, %v513
        %v515 = vrot.slane %v510, %v514
        %v517 = vadd.f32 %v509, %v515
        %518 = vst [vmem:[#allocation2] sm:$0x3] 0.0
        %519 = vst [vmem:[#allocation2 + $0xa] sm:$0x3] 0.0
        %520 = vst [vmem:[#allocation2 + $0x2] sm:$0xff] %v517
        %v521 = vld [vmem:[#allocation2] ss:$3 sm:$0x7]
        %v522 = vpack.c.bf16 %v521, %v521
        %vm523 = vcmask 1041408
        %vm524 = vsmask.f32 1280
        %vm525 = vmand %vm523, %vm524
        %v526 = vld [vmem:[#allocation3] sm:$0x3]
        %v527 = vsel %vm525, %v522, %v526
        %528 = vst [vmem:[#allocation3] sm:$0x3] %v527
        %s529 = scalar_lea.vmem [#allocation2], 1
        %v530 = vld [vmem:[%s529] ss:$3 sm:$0x7]
        %v531 = vpack.c.bf16 %v530, %v530
        %v532 = vld [vmem:[#allocation3 + $0x2] sm:$0x3]
        %v533 = vsel %vm525, %v531, %v532
        %534 = vst [vmem:[#allocation3 + $0x2] sm:$0x3] %v533
        %s535 = scalar_lea.vmem [#allocation2], 2
        %v536 = vld [vmem:[%s535] ss:$3 sm:$0x7]
        %v537 = vpack.c.bf16 %v536, %v536
        %v538 = vld [vmem:[#allocation3 + $0x4] sm:$0x3]
        %v539 = vsel %vm525, %v537, %v538
        %540 = vst [vmem:[#allocation3 + $0x4] sm:$0x3] %v539
        %s541 = scalar_lea.vmem [#allocation2], 3
        %v542 = vld [vmem:[%s541] ss:$3 sm:$0x7]
        %v543 = vpack.c.bf16 %v542, %v542
        %v544 = vld [vmem:[#allocation3 + $0x6] sm:$0x3]
        %v545 = vsel %vm525, %v543, %v544
        %546 = vst [vmem:[#allocation3 + $0x6] sm:$0x3] %v545
        %s547 = scalar_lea.vmem [#allocation2], 4
        %v548 = vld [vmem:[%s547] ss:$3 sm:$0x7]
        %v549 = vpack.c.bf16 %v548, %v548
        %v550 = vld [vmem:[#allocation3 + $0x8] sm:$0x3]
        %v551 = vsel %vm525, %v549, %v550
        %552 = vst [vmem:[#allocation3 + $0x8] sm:$0x3] %v551
        %v553 = vld [vmem:[#allocation3] sm:$0xff]
        %v554 = vld [vmem:[#allocation3 + $0x8] sm:$0x3]
        %v555 = vld [vmem:[#allocation9] sm:$0xf]
        %v556 = vld [vmem:[#allocation9 + $0x4] sm:$0xf]
        %v557 = vld [vmem:[#allocation9 + $0x8] sm:$0xf]
        %v558 = vld [vmem:[#allocation9 + $0xc] sm:$0xf]
        %v559 = vld [vmem:[#allocation9 + $0x10] sm:$0xf]
        %v560 = vld [vmem:[#allocation9 + $0x14] sm:$0xf]
        %v561 = vld [vmem:[#allocation9 + $0x18] sm:$0xf]
        %v562 = vld [vmem:[#allocation9 + $0x1c] sm:$0xf]
        %v563 = vld [vmem:[#allocation9 + $0x20] sm:$0xf]
        %v564 = vld [vmem:[#allocation9 + $0x24] sm:$0xf]
        %v565 = vld [vmem:[#allocation9 + $0x28] sm:$0xf]
        %v566 = vld [vmem:[#allocation9 + $0x2c] sm:$0xf]
        %v567 = vld [vmem:[#allocation9 + $0x30] sm:$0xf]
        %v568 = vld [vmem:[#allocation9 + $0x34] sm:$0xf]
        %v569 = vld [vmem:[#allocation9 + $0x38] sm:$0xf]
        %v570 = vld [vmem:[#allocation9 + $0x3c] sm:$0xf]
        %v571 = vld [vmem:[#allocation9 + $0x40] sm:$0xf]
        %v572 = vld [vmem:[#allocation9 + $0x44] sm:$0xf]
        %v573 = vld [vmem:[#allocation9 + $0x48] sm:$0xf]
        %v574 = vld [vmem:[#allocation9 + $0x4c] sm:$0xf]
        %v575 = vld [vmem:[#allocation9 + $0x50] sm:$0xf]
        %v576 = vld [vmem:[#allocation9 + $0x54] sm:$0xf]
        %v577 = vld [vmem:[#allocation9 + $0x58] sm:$0xf]
        %v578 = vld [vmem:[#allocation9 + $0x5c] sm:$0xf]
        %v579 = vld [vmem:[#allocation9 + $0x60] sm:$0xf]
        %v580 = vld [vmem:[#allocation9 + $0x64] sm:$0xf]
        %v581 = vld [vmem:[#allocation9 + $0x68] sm:$0xf]
        %v582 = vld [vmem:[#allocation9 + $0x6c] sm:$0xf]
        %v583 = vld [vmem:[#allocation9 + $0x70] sm:$0xf]
        %v584 = vld [vmem:[#allocation9 + $0x74] sm:$0xf]
        %v585 = vld [vmem:[#allocation9 + $0x78] sm:$0xf]
        %v586 = vld [vmem:[#allocation9 + $0x7c] sm:$0xf]
        %v587 = vld [vmem:[#allocation9 + $0x80] sm:$0xf]
        %v588 = vld [vmem:[#allocation9 + $0x84] sm:$0xf]
        %v589 = vld [vmem:[#allocation9 + $0x88] sm:$0xf]
        %v590 = vld [vmem:[#allocation9 + $0x8c] sm:$0xf]
        %v591 = vld [vmem:[#allocation9 + $0x90] sm:$0xf]
        %v592 = vld [vmem:[#allocation9 + $0x94] sm:$0xf]
        %v593 = vld [vmem:[#allocation9 + $0x98] sm:$0xf]
        %v594 = vld [vmem:[#allocation9 + $0x9c] sm:$0xf]
        %v595 = vld [vmem:[#allocation9 + $0xa0] sm:$0xf]
        %v596 = vld [vmem:[#allocation9 + $0xa4] sm:$0xf]
        %v597 = vld [vmem:[#allocation9 + $0xa8] sm:$0xf]
        %v598 = vld [vmem:[#allocation9 + $0xac] sm:$0xf]
        %v599 = vld [vmem:[#allocation9 + $0xb0] sm:$0xf]
        %v600 = vld [vmem:[#allocation9 + $0xb4] sm:$0xf]
        %v601 = vld [vmem:[#allocation9 + $0xb8] sm:$0xf]
        %v602 = vld [vmem:[#allocation9 + $0xbc] sm:$0xf]
        %v603 = vld [vmem:[#allocation9 + $0xc0] sm:$0xf]
        %v604 = vld [vmem:[#allocation9 + $0xc4] sm:$0xf]
        %v605 = vld [vmem:[#allocation9 + $0xc8] sm:$0xf]
        %v606 = vld [vmem:[#allocation9 + $0xcc] sm:$0xf]
        %v607 = vld [vmem:[#allocation9 + $0xd0] sm:$0xf]
        %v608 = vld [vmem:[#allocation9 + $0xd4] sm:$0xf]
        %v609 = vld [vmem:[#allocation9 + $0xd8] sm:$0xf]
        %v610 = vld [vmem:[#allocation9 + $0xdc] sm:$0xf]
        %v611 = vld [vmem:[#allocation9 + $0xe0] sm:$0xf]
        %v612 = vld [vmem:[#allocation9 + $0xe4] sm:$0xf]
        %v613 = vld [vmem:[#allocation9 + $0xe8] sm:$0xf]
        %v614 = vld [vmem:[#allocation9 + $0xec] sm:$0xf]
        %v615 = vld [vmem:[#allocation9 + $0xf0] sm:$0xf]
        %v616 = vld [vmem:[#allocation9 + $0xf4] sm:$0xf]
        %v617 = vld [vmem:[#allocation9 + $0xf8] sm:$0xf]
        %v618 = vld [vmem:[#allocation9 + $0xfc] sm:$0xf]
        %v619 = vld [vmem:[#allocation9 + $0x100] sm:$0xf]
        %v620 = vld [vmem:[#allocation9 + $0x104] sm:$0xf]
        %v621 = vld [vmem:[#allocation9 + $0x108] sm:$0xf]
        %v622 = vld [vmem:[#allocation9 + $0x10c] sm:$0xf]
        %v623 = vld [vmem:[#allocation9 + $0x110] sm:$0xf]
        %v624 = vld [vmem:[#allocation9 + $0x114] sm:$0xf]
        %v625 = vld [vmem:[#allocation9 + $0x118] sm:$0xf]
        %v626 = vld [vmem:[#allocation9 + $0x11c] sm:$0xf]
        %v627 = vld [vmem:[#allocation9 + $0x120] sm:$0xf]
        %v628 = vld [vmem:[#allocation9 + $0x124] sm:$0xf]
        %v629 = vld [vmem:[#allocation9 + $0x128] sm:$0xf]
        %v630 = vld [vmem:[#allocation9 + $0x12c] sm:$0xf]
        %v631 = vld [vmem:[#allocation9 + $0x130] sm:$0xf]
        %v632 = vld [vmem:[#allocation9 + $0x134] sm:$0xf]
        %v633 = vld [vmem:[#allocation9 + $0x138] sm:$0xf]
        %v634 = vld [vmem:[#allocation9 + $0x13c] sm:$0xf]
        %v635 = vld [vmem:[%s6] sm:$0x1]
        %v637 = vlaneseq
        %v638 = vshrl.u32 %v637, 7
        %v639 = vsub.s32 0, %v638
        %v640 = vrot.slane %v635, %v639
        %v644 = vcombine.high %v553, %v553
        %v646 = vunpack.c.l.s4 1983009808
        %v647 = vunpack.c.0.s8 %v646
        %v648 = vlaneseq
        %v649 = vshrl.u32 %v648, 7
        %v650 = vsub.s32 %v647, %v649
        %v651 = vrot.slane %v553, %v650
        %v653 = vunpack.c.l.s4 1983009808
        %v654 = vunpack.c.0.s8 %v653
        %v655 = vlaneseq
        %v656 = vshrl.u32 %v655, 7
        %v657 = vsub.s32 %v654, %v656
        %v658 = vrot.slane %v644, %v657
        %v659 = vcombine.high %v651, %v651
        %v660 = vcombine.high %v658, %v658
        %v662 = vunpack.c.l.s4 1983009808
        %v663 = vunpack.c.0.s8 %v662
        %v664 = vlaneseq
        %v665 = vshrl.u32 %v664, 7
        %v666 = vsub.s32 %v663, %v665
        %v667 = vrot.slane %v554, %v666
        %v753 = vunpack.c.l.b16 %v555
        %v754 = vunpack.c.l.b16 %v556
        %v755 = vunpack.c.l.b16 %v557
        %v756 = vunpack.c.l.b16 %v558
        %v757 = vunpack.c.l.b16 %v559
        %v758 = vunpack.c.l.b16 %v560
        %v759 = vunpack.c.l.b16 %v561
        %v760 = vunpack.c.l.b16 %v562
        %v761 = vunpack.c.l.b16 %v563
        %v762 = vunpack.c.l.b16 %v564
        %v763 = vunpack.c.l.b16 %v565
        %v764 = vunpack.c.l.b16 %v566
        %v765 = vunpack.c.l.b16 %v567
        %v766 = vunpack.c.l.b16 %v568
        %v767 = vunpack.c.l.b16 %v569
        %v768 = vunpack.c.l.b16 %v570
        %v769 = vunpack.c.l.b16 %v571
        %v770 = vunpack.c.l.b16 %v572
        %v771 = vunpack.c.l.b16 %v573
        %v772 = vunpack.c.l.b16 %v574
        %v773 = vunpack.c.l.b16 %v575
        %v774 = vunpack.c.l.b16 %v576
        %v775 = vunpack.c.l.b16 %v577
        %v776 = vunpack.c.l.b16 %v578
        %v777 = vunpack.c.l.b16 %v579
        %v778 = vunpack.c.l.b16 %v580
        %v779 = vunpack.c.l.b16 %v581
        %v780 = vunpack.c.l.b16 %v582
        %v781 = vunpack.c.l.b16 %v583
        %v782 = vunpack.c.l.b16 %v584
        %v783 = vunpack.c.l.b16 %v585
        %v784 = vunpack.c.l.b16 %v586
        %v785 = vunpack.c.l.b16 %v587
        %v786 = vunpack.c.l.b16 %v588
        %v787 = vunpack.c.l.b16 %v589
        %v788 = vunpack.c.l.b16 %v590
        %v789 = vunpack.c.l.b16 %v591
        %v790 = vunpack.c.l.b16 %v592
        %v791 = vunpack.c.l.b16 %v593
        %v792 = vunpack.c.l.b16 %v594
        %v793 = vunpack.c.l.b16 %v595
        %v794 = vunpack.c.l.b16 %v596
        %v795 = vunpack.c.l.b16 %v597
        %v796 = vunpack.c.l.b16 %v598
        %v797 = vunpack.c.l.b16 %v599
        %v798 = vunpack.c.l.b16 %v600
        %v799 = vunpack.c.l.b16 %v601
        %v800 = vunpack.c.l.b16 %v602
        %v801 = vunpack.c.l.b16 %v603
        %v802 = vunpack.c.l.b16 %v604
        %v803 = vunpack.c.l.b16 %v605
        %v804 = vunpack.c.l.b16 %v606
        %v805 = vunpack.c.l.b16 %v607
        %v806 = vunpack.c.l.b16 %v608
        %v807 = vunpack.c.l.b16 %v609
        %v808 = vunpack.c.l.b16 %v610
        %v809 = vunpack.c.l.b16 %v611
        %v810 = vunpack.c.l.b16 %v612
        %v811 = vunpack.c.l.b16 %v613
        %v812 = vunpack.c.l.b16 %v614
        %v813 = vunpack.c.l.b16 %v615
        %v814 = vunpack.c.l.b16 %v616
        %v815 = vunpack.c.l.b16 %v617
        %v816 = vunpack.c.l.b16 %v618
        %v817 = vunpack.c.l.b16 %v619
        %v818 = vunpack.c.l.b16 %v620
        %v819 = vunpack.c.l.b16 %v621
        %v820 = vunpack.c.l.b16 %v622
        %v821 = vunpack.c.l.b16 %v623
        %v822 = vunpack.c.l.b16 %v624
        %v823 = vunpack.c.l.b16 %v625
        %v824 = vunpack.c.l.b16 %v626
        %v825 = vunpack.c.l.b16 %v627
        %v826 = vunpack.c.l.b16 %v628
        %v827 = vunpack.c.l.b16 %v629
        %v828 = vunpack.c.l.b16 %v630
        %v829 = vunpack.c.l.b16 %v631
        %v830 = vunpack.c.l.b16 %v632
        %v831 = vunpack.c.l.b16 %v633
        %v832 = vunpack.c.l.b16 %v634
        %v833 = vpack.c.b16 %v754, %v753
        %v834 = vpack.c.b16 %v756, %v755
        %v835 = vpack.c.b16 %v758, %v757
        %v836 = vpack.c.b16 %v760, %v759
        %v837 = vpack.c.b16 %v762, %v761
        %v838 = vpack.c.b16 %v764, %v763
        %v839 = vpack.c.b16 %v766, %v765
        %v840 = vpack.c.b16 %v768, %v767
        %v841 = vpack.c.b16 %v770, %v769
        %v842 = vpack.c.b16 %v772, %v771
        %v843 = vpack.c.b16 %v774, %v773
        %v844 = vpack.c.b16 %v776, %v775
        %v845 = vpack.c.b16 %v778, %v777
        %v846 = vpack.c.b16 %v780, %v779
        %v847 = vpack.c.b16 %v782, %v781
        %v848 = vpack.c.b16 %v784, %v783
        %v849 = vpack.c.b16 %v786, %v785
        %v850 = vpack.c.b16 %v788, %v787
        %v851 = vpack.c.b16 %v790, %v789
        %v852 = vpack.c.b16 %v792, %v791
        %v853 = vpack.c.b16 %v794, %v793
        %v854 = vpack.c.b16 %v796, %v795
        %v855 = vpack.c.b16 %v798, %v797
        %v856 = vpack.c.b16 %v800, %v799
        %v857 = vpack.c.b16 %v802, %v801
        %v858 = vpack.c.b16 %v804, %v803
        %v859 = vpack.c.b16 %v806, %v805
        %v860 = vpack.c.b16 %v808, %v807
        %v861 = vpack.c.b16 %v810, %v809
        %v862 = vpack.c.b16 %v812, %v811
        %v863 = vpack.c.b16 %v814, %v813
        %v864 = vpack.c.b16 %v816, %v815
        %v865 = vpack.c.b16 %v818, %v817
        %v866 = vpack.c.b16 %v820, %v819
        %v867 = vpack.c.b16 %v822, %v821
        %v868 = vpack.c.b16 %v824, %v823
        %v869 = vpack.c.b16 %v826, %v825
        %v870 = vpack.c.b16 %v828, %v827
        %v871 = vpack.c.b16 %v830, %v829
        %v872 = vpack.c.b16 %v832, %v831
        %913 = vmatprep.subr.bf16.mxu0 0
        %914 = vmatpush1.bf16.msra.mxu0 %v833
        %915 = vmatprep.subr.bf16.mxu0 0
        %916 = vmatpush1.bf16.msra.mxu0 %v834
        %917 = vmatprep.subr.bf16.mxu0 0
        %918 = vmatpush1.bf16.msra.mxu0 %v835
        %919 = vmatprep.subr.bf16.mxu0 0
        %920 = vmatpush1.bf16.msra.mxu0 %v836
        %921 = vmatprep.subr.bf16.mxu0 0
        %922 = vmatpush1.bf16.msra.mxu0 %v837
        %923 = vmatprep.subr.bf16.mxu0 0
        %924 = vmatpush1.bf16.msra.mxu0 %v838
        %925 = vmatprep.subr.bf16.mxu0 0
        %926 = vmatpush1.bf16.msra.mxu0 %v839
        %927 = vmatprep.subr.bf16.mxu0 0
        %928 = vmatpush1.bf16.msra.mxu0 %v840
        %929 = vmatprep.subr.bf16.mxu0 0
        %930 = vmatpush1.bf16.msra.mxu0 %v841
        %931 = vmatprep.subr.bf16.mxu0 0
        %932 = vmatpush1.bf16.msra.mxu0 %v842
        %933 = vmatprep.subr.bf16.mxu0 0
        %934 = vmatpush1.bf16.msra.mxu0 %v843
        %935 = vmatprep.subr.bf16.mxu0 0
        %936 = vmatpush1.bf16.msra.mxu0 %v844
        %937 = vmatprep.subr.bf16.mxu0 0
        %938 = vmatpush1.bf16.msra.mxu0 %v845
        %939 = vmatprep.subr.bf16.mxu0 0
        %940 = vmatpush1.bf16.msra.mxu0 %v846
        %941 = vmatprep.subr.bf16.mxu0 0
        %942 = vmatpush1.bf16.msra.mxu0 %v847
        %943 = vmatprep.subr.bf16.mxu0 0
        %944 = vmatpush1.bf16.msra.mxu0 %v848
        %945 = vmatprep.mubr.bf16.mxu0 %v659
        %946 = vmatmul.mubr.bf16.gmra.mrb[0].mxu0 %v651
        %v947 = vpop.f32.mrb[0].mxu0
        %v948 = vadd.f32 %v640, %v947
        %v949 = vpop.f32.mrb[0].mxu0
        %v950 = vpop.f32.mrb[0].mxu0
        %v951 = vpop.f32.mrb[0].mxu0
        %952 = vdwg.mxu0
        %953 = vmatprep.subr.bf16.mxu0 0
        %954 = vmatpush1.bf16.msra.mxu0 %v849
        %955 = vmatprep.subr.bf16.mxu0 0
        %956 = vmatpush1.bf16.msra.mxu0 %v850
        %957 = vmatprep.subr.bf16.mxu0 0
        %958 = vmatpush1.bf16.msra.mxu0 %v851
        %959 = vmatprep.subr.bf16.mxu0 0
        %960 = vmatpush1.bf16.msra.mxu0 %v852
        %961 = vmatprep.subr.bf16.mxu0 0
        %962 = vmatpush1.bf16.msra.mxu0 %v853
        %963 = vmatprep.subr.bf16.mxu0 0
        %964 = vmatpush1.bf16.msra.mxu0 %v854
        %965 = vmatprep.subr.bf16.mxu0 0
        %966 = vmatpush1.bf16.msra.mxu0 %v855
        %967 = vmatprep.subr.bf16.mxu0 0
        %968 = vmatpush1.bf16.msra.mxu0 %v856
        %969 = vmatprep.subr.bf16.mxu0 0
        %970 = vmatpush1.bf16.msra.mxu0 %v857
        %971 = vmatprep.subr.bf16.mxu0 0
        %972 = vmatpush1.bf16.msra.mxu0 %v858
        %973 = vmatprep.subr.bf16.mxu0 0
        %974 = vmatpush1.bf16.msra.mxu0 %v859
        %975 = vmatprep.subr.bf16.mxu0 0
        %976 = vmatpush1.bf16.msra.mxu0 %v860
        %977 = vmatprep.subr.bf16.mxu0 0
        %978 = vmatpush1.bf16.msra.mxu0 %v861
        %979 = vmatprep.subr.bf16.mxu0 0
        %980 = vmatpush1.bf16.msra.mxu0 %v862
        %981 = vmatprep.subr.bf16.mxu0 0
        %982 = vmatpush1.bf16.msra.mxu0 %v863
        %983 = vmatprep.subr.bf16.mxu0 0
        %984 = vmatpush1.bf16.msra.mxu0 %v864
        %985 = vmatprep.mubr.bf16.mxu0 %v660
        %986 = vmatmul.mubr.bf16.gmra.mrb[0].mxu0 %v658
        %v987 = vpop.f32.mrb[0].mxu0
        %v988 = vadd.f32 %v948, %v987
        %v989 = vpop.f32.mrb[0].mxu0
        %v990 = vpop.f32.mrb[0].mxu0
        %v991 = vpop.f32.mrb[0].mxu0
        %992 = vdwg.mxu0
        %993 = vmatprep.subr.bf16.mxu0 0
        %994 = vmatpush1.bf16.msra.mxu0 %v865
        %995 = vmatprep.subr.bf16.mxu0 0
        %996 = vmatpush1.bf16.msra.mxu0 %v866
        %997 = vmatprep.subr.bf16.mxu0 0
        %998 = vmatpush1.bf16.msra.mxu0 %v867
        %999 = vmatprep.subr.bf16.mxu0 0
        %1000 = vmatpush1.bf16.msra.mxu0 %v868
        %1001 = vmatprep.subr.bf16.mxu0 0
        %1002 = vmatpush1.bf16.msra.mxu0 %v869
        %1003 = vmatprep.subr.bf16.mxu0 0
        %1004 = vmatpush1.bf16.msra.mxu0 %v870
        %1005 = vmatprep.subr.bf16.mxu0 0
        %1006 = vmatpush1.bf16.msra.mxu0 %v871
        %1007 = vmatprep.subr.bf16.mxu0 0
        %1008 = vmatpush1.bf16.msra.mxu0 %v872
        %1009 = vmatprep.subr.bf16.mxu0 0
        %1010 = vmatpush1.bf16.msra.mxu0 0
        %1011 = vmatprep.subr.bf16.mxu0 0
        %1012 = vmatpush1.bf16.msra.mxu0 0
        %1013 = vmatprep.subr.bf16.mxu0 0
        %1014 = vmatpush1.bf16.msra.mxu0 0
        %1015 = vmatprep.subr.bf16.mxu0 0
        %1016 = vmatpush1.bf16.msra.mxu0 0
        %1017 = vmatprep.subr.bf16.mxu0 0
        %1018 = vmatpush1.bf16.msra.mxu0 0
        %1019 = vmatprep.subr.bf16.mxu0 0
        %1020 = vmatpush1.bf16.msra.mxu0 0
        %1021 = vmatprep.subr.bf16.mxu0 0
        %1022 = vmatpush1.bf16.msra.mxu0 0
        %1023 = vmatprep.subr.bf16.mxu0 0
        %1024 = vmatpush1.bf16.msra.mxu0 0
        %1025 = vmatprep.mubr.bf16.mxu0 0
        %1026 = vmatmul.mubr.bf16.gmra.mrb[0].mxu0 %v667
        %v1027 = vpop.f32.mrb[0].mxu0
        %v1028 = vadd.f32 %v988, %v1027
        %v1029 = vpop.f32.mrb[0].mxu0
        %v1030 = vpop.f32.mrb[0].mxu0
        %v1031 = vpop.f32.mrb[0].mxu0
        %1032 = vdwg.mxu0
        %v1033 = vmax.f32 %v1028, 0.0
        %vm1034 = vcmask 1042432
        %v1035 = vsel %vm1034, %v1033, 0.0
        %1036 = vadd.xlane.f32.xlu0 %v1035
        %v1037 = vpop.xlane.xlu0 %1036
        %v1038 = vmul.f32 %v1037, %v492
        %v1039 = vsub.f32 %v1033, %v1038
        %v1040 = vmul.f32 %v1039, %v1039
        %v1041 = vsel %vm1034, %v1040, 0.0
        %1042 = vadd.xlane.f32.xlu0 %v1041
        %v1043 = vpop.xlane.xlu0 %1042
        %v1044 = vmul.f32 %v1043, %v492
        %v1045 = vadd.f32 %v1044, 0.0001
        %v1046 = vrsqrt.pop %v1045
        %v1047 = vmul.f32 %v1039, %v1046
        %v1048 = vld [vmem:[%s7] sm:$0x1]
        %v1050 = vlaneseq
        %v1051 = vshrl.u32 %v1050, 7
        %v1052 = vsub.s32 0, %v1051
        %v1053 = vrot.slane %v1048, %v1052
        %v1055 = vmul.f32 %v1047, %v1053
        %v1056 = vld [vmem:[%s8] sm:$0x1]
        %v1058 = vlaneseq
        %v1059 = vshrl.u32 %v1058, 7
        %v1060 = vsub.s32 0, %v1059
        %v1061 = vrot.slane %v1056, %v1060
        %v1063 = vadd.f32 %v1055, %v1061
        %v1064 = vsel %vm1034, %v1063, 0.0
        %v1065 = vrot.slane %v1064, 4
        %v1066 = vadd.f32 %v1064, %v1065
        %v1067 = vrot.slane %v1066, 2
        %v1068 = vadd.f32 %v1066, %v1067
        %v1069 = vrot.slane %v1068, 1
        %v1070 = vadd.f32 %v1068, %v1069
        %v1071 = vrcp.pop 3.0
        %v1072 = vmul.f32 %v1070, %v1071
        %1073 = vst [vmem:[%s375] sm:$0x1] %v1072
        %s1074 = sand.u32 %s229, 1
        %s1075 = scalar_lea.sflag [#allocation6], %s1074
        %s1076 = sand.u32 %s229, 1
        %s1077 = scalar_lea.vmem [#allocation10], %s1076
        // Predicated region
        $region69: #{tpu_custom_call.1} parent=55 // pred_check
          %p1078 = pneg %p239
        $region70: #{tpu_custom_call.1} parent=55 // pred_check_branch
          %1080 = sbr.rel (%p1078) target = $region72
        $region71: #{tpu_custom_call.1} parent=55 // pred_region
          %s1082 = ssub.s32 16, 16
          %1083 = vsyncadd %s1075, %s1082
          %s1084 = smul.addr %s27, 16
          %s1085 = scalar_lea.hbm %s9, %s1084
          %s1087 = sshll.u32 %s1077, 4
          %s1088 = int_to_ptr.vmem [resolvable:$true] %s1087
          %1090 = dma.vmem_to_hbm [thread:$0]  %s1088, 16, %s1085, %s1075
        $region72: #{tpu_custom_call.1} parent=55 // pred_fallthru
          _
      $region56: #{tpu_custom_call.1} parent=5 // pred_fallthru
        _
      %p1091 = scmp.le.s32.totalorder 2, %s22
      // Predicated region
      $region73: #{tpu_custom_call.1} parent=5 // pred_check
        %p1092 = pneg %p1091
      $region74: #{tpu_custom_call.1} parent=5 // pred_check_branch
        %1094 = sbr.rel (%p1092) target = $region76
      $region75: #{tpu_custom_call.1} parent=5 // pred_region
        %s1095 = ssub.s32 %s22, 2
        // Predicated region
        $region77: #{tpu_custom_call.1} parent=75 // pred_check
          %p1096 = pneg %p245
        $region78: #{tpu_custom_call.1} parent=75 // pred_check_branch
          %1098 = sbr.rel (%p1096) target = $region80
        $region79: #{tpu_custom_call.1} parent=75 // pred_region
          %s1099 = sand.u32 %s230, 1
          %s1100 = scalar_lea.sflag [#allocation6], %s1099
          %s1101 = sand.u32 %s230, 1
          %s1102 = scalar_lea.vmem [#allocation10], %s1101
          %1103 = dma.done %s1100, 16
        $region80: #{tpu_custom_call.1} parent=75 // pred_fallthru
          _
      $region76: #{tpu_custom_call.1} parent=5 // pred_fallthru
        _
    $region6: #{tpu_custom_call.1} parent=1 // loop_footer
      %s26 = sadd.s32 1, %s22
    $region7: #{tpu_custom_call.1} parent=1 // loop_footer_branch
      %21 = sbr.rel target = $region3
    $region8: #{tpu_custom_call.1} parent=1 // loop_exit
      _
    %1104 = vsyncpa [#allocation5], 1
    %s1105 = scalar_lea.sflag [#allocation5], 1
    %1106 = vsyncpa %s1105, 1
    %1107 = vsyncpa [#allocation8], 1
    %1108 = vsyncpa [#allocation6], 1
    %s1109 = scalar_lea.sflag [#allocation6], 1
    %1110 = vsyncpa %s1109, 1

</llo_original>
